<compile_context>
chip_gen: v5e
topology: v5e:2x2
jax: 0.10.0
libtpu: 0.0.40
codegen_flags: <defaults>
</compile_context>

<pallas_src>
import functools

import jax
import jax.numpy as jnp
from jax import lax
from jax.experimental import pallas as pl
from jax.experimental.pallas import tpu as pltpu


def lam_gconv_kernel(a_ref, x_ref, wt_ref, o_ref, *, batch, n_in, fp):
    # a_ref : (N, N)              adjacency (f32), shared across the batch
    # x_ref : (N, B*F_in)         batches stacked along lanes, matmul dtype
    # wt_ref: (B*F_in + 1, B*Fp)  rows 0..B*F_in-1 = block-diag padded W^T,
    #                             last row = bias tiled B times, matmul dtype
    # o_ref : (B, N, Fp)
    A = a_ref[...].astype(jnp.float32)

    # Symmetric normalization (computed once per call):
    #   d_j = rsqrt(colsum_j + 1e-5);  L_ij = d_i * A_ij * d_j
    d = lax.rsqrt(jnp.sum(A, axis=0) + 1e-5)                 # (N,)   EUP rsqrt
    L = d[:, None] * A * d[None, :]                          # (N, N) f32

    W = wt_ref[: batch * n_in, :]                            # (B*F_in, B*Fp)
    bias_row = wt_ref[batch * n_in:, :].astype(jnp.float32)  # (1, B*Fp)

    # One lane-dense MXU matmul for the whole batch, f32 accumulation.
    xw = jnp.dot(x_ref[...], W,
                 preferred_element_type=jnp.float32)         # (N, B*Fp) f32
    # Second matmul with f32 inputs (K = N is tiny) -> no double rounding.
    y = jnp.dot(L, xw, preferred_element_type=jnp.float32)   # (N, B*Fp) f32

    # Single bias + ReLU epilogue over the fused slab (bias already tiled).
    z = jnp.maximum(y + bias_row, 0.0).astype(o_ref.dtype)   # (N, B*Fp)

    # Per-batch stores: 128-aligned column slices -> lane-dense, unmasked vst.
    for b in range(batch):                                   # static, B tiny
        o_ref[b] = z[:, b * fp:(b + 1) * fp]


def lam_gconv(X, A, W, bias, *, matmul_dtype=jnp.bfloat16):
    """X: (B, N, F_in), A: (N, N), W: (F_out, F_in), bias: (F_out,)."""
    B, N, F_in = X.shape
    F_out = W.shape[0]
    Fp = ((F_out + 127) // 128) * 128                 # lane-dense output width

    # Grid-invariant preprocessing, done once by XLA outside the kernel.
    Wt_pad = jnp.pad(W.T, ((0, 0), (0, Fp - F_out)))                 # (F_in, Fp)
    Wt_bd = jnp.kron(jnp.eye(B, dtype=Wt_pad.dtype), Wt_pad)         # (B*F_in, B*Fp)
    bias_row = jnp.tile(jnp.pad(bias, (0, Fp - F_out)), B).reshape(1, B * Fp)
    Wt_aug = jnp.concatenate([Wt_bd, bias_row], axis=0).astype(matmul_dtype)
    X_wide = X.transpose(1, 0, 2).reshape(N, B * F_in).astype(matmul_dtype)

    kernel = functools.partial(lam_gconv_kernel, batch=B, n_in=F_in, fp=Fp)

    vmem = pl.BlockSpec(memory_space=pltpu.MemorySpace.VMEM)
    out_pad = pl.pallas_call(
        kernel,
        out_shape=jax.ShapeDtypeStruct((B, N, Fp), X.dtype),
        in_specs=[vmem, vmem, vmem],                  # A, X_wide, Wt_aug
        out_specs=vmem,
    )(A, X_wide, Wt_aug)

    # One-time XLA slice to drop the lane padding.
    return out_pad[..., :F_out]


def lam_gconv_ref(X, A, W, bias):
    """Pure-JAX reference mirroring the PyTorch forward (f32 everywhere)."""
    B = X.shape[0]
    A_hat = jnp.broadcast_to(A[None], (B,) + A.shape)
    D_hat = (jnp.sum(A_hat, axis=1) + 1e-5) ** -0.5
    L = D_hat[:, :, None] * A_hat * D_hat[:, None, :]
    Y = jnp.einsum('bij,bjk->bik', L, X)
    Z = jnp.einsum('bnk,ok->bno', Y, W) + bias
    return jnp.maximum(Z, 0.0)


if __name__ == "__main__":
    # Small shapes consistent with the module: batch=2, N=16 graph nodes,
    # in_features=16, out_features=32.
    B, N, F_in, F_out = 2, 16, 16, 32

    key = jax.random.PRNGKey(0)
    kx, ka, kw, kb = jax.random.split(key, 4)

    X = jax.random.normal(kx, (B, N, F_in), dtype=jnp.float32)
    # Adjacency-like non-negative matrix (so the D^-1/2 normalization is sane).
    A = jax.random.uniform(ka, (N, N), dtype=jnp.float32)

    # Deterministic nn.Linear-style init: U(-1/sqrt(F_in), 1/sqrt(F_in)).
    bound = 1.0 / (F_in ** 0.5)
    W = jax.random.uniform(kw, (F_out, F_in), dtype=jnp.float32,
                           minval=-bound, maxval=bound)
    bias = jax.random.uniform(kb, (F_out,), dtype=jnp.float32,
                              minval=-bound, maxval=bound)

    ref = lam_gconv_ref(X, A, W, bias)

    # Exact path (f32 MXU inputs): tight tolerance.
    out_f32 = jax.block_until_ready(
        lam_gconv(X, A, W, bias, matmul_dtype=jnp.float32))
    assert out_f32.shape == (B, N, F_out)
    assert jnp.allclose(out_f32, ref, atol=1e-4, rtol=1e-4), \
        "f32 kernel mismatch vs reference"

    # bf16 MXU-input path (default, fast path on v5e/v6e/v7x): relaxed tol.
    out_bf16 = jax.block_until_ready(lam_gconv(X, A, W, bias))
    assert out_bf16.shape == (B, N, F_out)
    assert jnp.allclose(out_bf16, ref, atol=5e-2, rtol=5e-2), \
        "bf16 kernel mismatch vs reference"

    print("KERNEL_OK")
</pallas_src>

<mosaic_0001>
module attributes {stable_mosaic.version = 11 : i64} {
  func.func @lam_gconv_kernel(%arg0: memref<16x16xf32, #tpu.memory_space<vmem>>, %arg1: memref<16x32xf32, #tpu.memory_space<vmem>>, %arg2: memref<33x256xf32, #tpu.memory_space<vmem>>, %arg3: memref<2x16x128xf32, #tpu.memory_space<vmem>>) attributes {dimension_semantics = [], scalar_prefetch = 0 : i64, scratch_operands = 0 : i64, tpu.core_type = #tpu.core_type<tc>} {
    %c0 = arith.constant 0 : index
    %c0_0 = arith.constant 0 : index
    %0 = vector.load %arg0[%c0, %c0_0] : memref<16x16xf32, #tpu.memory_space<vmem>>, vector<16x16xf32>
    %cst = arith.constant dense<0.000000e+00> : vector<16xf32>
    %1 = vector.multi_reduction <add>, %0, %cst [0] : vector<16x16xf32> to vector<16xf32>
    %cst_1 = arith.constant 9.99999974E-6 : f32
    %2 = vector.broadcast %cst_1 : f32 to vector<16xf32>
    %3 = arith.addf %1, %2 : vector<16xf32>
    %4 = math.rsqrt %3 : vector<16xf32>
    %5 = vector.shape_cast %4 : vector<16xf32> to vector<16x1xf32>
    %6 = vector.broadcast %5 : vector<16x1xf32> to vector<16x16xf32>
    %7 = arith.mulf %6, %0 : vector<16x16xf32>
    %8 = vector.shape_cast %4 : vector<16xf32> to vector<1x16xf32>
    %9 = vector.broadcast %8 : vector<1x16xf32> to vector<16x16xf32>
    %10 = arith.mulf %7, %9 : vector<16x16xf32>
    %c0_2 = arith.constant 0 : index
    %c0_3 = arith.constant 0 : index
    %11 = vector.load %arg2[%c0_2, %c0_3] : memref<33x256xf32, #tpu.memory_space<vmem>>, vector<32x256xf32>
    %c32 = arith.constant 32 : index
    %c0_4 = arith.constant 0 : index
    %12 = vector.load %arg2[%c32, %c0_4] : memref<33x256xf32, #tpu.memory_space<vmem>>, vector<1x256xf32>
    %c0_5 = arith.constant 0 : index
    %c0_6 = arith.constant 0 : index
    %13 = vector.load %arg1[%c0_5, %c0_6] : memref<16x32xf32, #tpu.memory_space<vmem>>, vector<16x32xf32>
    %cst_7 = arith.constant dense<0.000000e+00> : vector<16x256xf32>
    %14 = tpu.matmul %13, %11, %cst_7 {dimension_numbers = #tpu.dot_dimension_numbers<[1], [0], [0], [1], [0, 0, 1, 1], [], []>} : vector<16x32xf32>, vector<32x256xf32>, vector<16x256xf32> -> vector<16x256xf32>
    %cst_8 = arith.constant dense<0.000000e+00> : vector<16x256xf32>
    %15 = tpu.matmul %10, %14, %cst_8 {dimension_numbers = #tpu.dot_dimension_numbers<[1], [0], [0], [1], [0, 0, 1, 1], [], []>} : vector<16x16xf32>, vector<16x256xf32>, vector<16x256xf32> -> vector<16x256xf32>
    %16 = vector.broadcast %12 : vector<1x256xf32> to vector<16x256xf32>
    %17 = arith.addf %15, %16 : vector<16x256xf32>
    %cst_9 = arith.constant 0.000000e+00 : f32
    %18 = vector.broadcast %cst_9 : f32 to vector<16x256xf32>
    %19 = arith.maximumf %17, %18 : vector<16x256xf32>
    %20 = vector.extract_strided_slice %19 {offsets = [0, 0], sizes = [16, 128], strides = [1, 1]} : vector<16x256xf32> to vector<16x128xf32>
    %c0_10 = arith.constant 0 : index
    %c0_11 = arith.constant 0 : index
    %c0_12 = arith.constant 0 : index
    %21 = vector.load %arg3[%c0_10, %c0_11, %c0_12] : memref<2x16x128xf32, #tpu.memory_space<vmem>>, vector<1x16x128xf32>
    %22 = vector.shape_cast %21 : vector<1x16x128xf32> to vector<16x128xf32>
    %23 = vector.shape_cast %20 : vector<16x128xf32> to vector<1x16x128xf32>
    tpu.vector_store %arg3[%c0_10, %c0_11, %c0_12], %23 {strides = array<i32>} : memref<2x16x128xf32, #tpu.memory_space<vmem>>, vector<1x16x128xf32>,
    %24 = vector.extract_strided_slice %19 {offsets = [0, 128], sizes = [16, 128], strides = [1, 1]} : vector<16x256xf32> to vector<16x128xf32>
    %c1 = arith.constant 1 : index
    %c0_13 = arith.constant 0 : index
    %c0_14 = arith.constant 0 : index
    %25 = vector.load %arg3[%c1, %c0_13, %c0_14] : memref<2x16x128xf32, #tpu.memory_space<vmem>>, vector<1x16x128xf32>
    %26 = vector.shape_cast %25 : vector<1x16x128xf32> to vector<16x128xf32>
    %27 = vector.shape_cast %24 : vector<16x128xf32> to vector<1x16x128xf32>
    tpu.vector_store %arg3[%c1, %c0_13, %c0_14], %27 {strides = array<i32>} : memref<2x16x128xf32, #tpu.memory_space<vmem>>, vector<1x16x128xf32>,
    return
  }
}

</mosaic_0001>

<llo_original>
// kernel: tpu_custom_call.1
$region0: #{tpu_custom_call.1}
  #allocation0 [shape = 'u32[]', space=smem, size = 0x4, offset = 0x4, fixed_abs, tag = 'smem constant byte address 0x4 - core index']
  #allocation1 [shape = 'u32[72,128]{1,0:T(1,128)}', space=vmem, size = 0x9000, scoped, tag = 'internal scratch']
  %s0 = inlined_call_operand.hbm [shape: f32[16,16], index: 0, kind: input, shape index: {}]
  %s1 = inlined_call_operand.hbm [shape: f32[16,32], index: 1, kind: input, shape index: {}]
  %s2 = inlined_call_operand.hbm [shape: f32[33,256], index: 2, kind: input, shape index: {}]
  %s3 = inlined_call_operand.hbm [shape: f32[2,16,128], index: 3, kind: output, shape index: {}]
  %s4 = sld [smem:[#allocation0]]
  $region34: #{tpu_custom_call.1} parent=0
    _
  %s6 = ssub.s32 1, %s4
  %s7 = scalar_select 0, %s6, %s4
  $region1: #{tpu_custom_call.1} parent=0
    #allocation2 [shape = 'u8[8192]{0}', space=vmem, size = 0x2000, scoped, tag = 'input window, operand 0, single buffered']
    #allocation3 [shape = 's32[1]{0}', space=sflag, size = 0x4, scoped, tag = 'scoped memory for tpu_custom_call.1']
    #allocation4 [shape = 's32[1]{0}', space=sflag, size = 0x4, scoped, tag = 'scoped memory for tpu_custom_call.1']
    #allocation5 [shape = 'u8[8192]{0}', space=vmem, size = 0x2000, scoped, tag = 'input window, operand 1, single buffered']
    #allocation6 [shape = 's32[1]{0}', space=sflag, size = 0x4, scoped, tag = 'scoped memory for tpu_custom_call.1']
    #allocation7 [shape = 'u8[40960]{0}', space=vmem, size = 0xa000, scoped, tag = 'input window, operand 2, single buffered']
    #allocation8 [shape = 'u8[16384]{0}', space=vmem, size = 0x4000, scoped, tag = 'output window, operand 0, single buffered']
    %8 = vsyncpa [#allocation3], 0
    %9 = vsyncpa [#allocation6], 0
    %10 = vsyncpa [#allocation4], 0
    // Predicated region
    $region2: #{tpu_custom_call.1} parent=1 // pred_check
      _
    $region3: #{tpu_custom_call.1} parent=1 // pred_check_branch
      %12 = sbr.rel (0) target = $region5
    $region4: #{tpu_custom_call.1} parent=1 // pred_region
      %14 = vsyncadd [#allocation3], 0
      %s15 = sshll.u32 %s0, 4
      %s16 = int_to_ptr.hbm [resolvable:$true] %s15
      %s17 = sshll.u32 [#allocation2], 4
      %s18 = int_to_ptr.vmem [resolvable:$true] %s17
      %23 = dma.hbm_to_vmem [thread:$0]  %s16, 256, %s18, [#allocation3], 128, 128, 8
    $region5: #{tpu_custom_call.1} parent=1 // pred_fallthru
      _
    // Predicated region
    $region6: #{tpu_custom_call.1} parent=1 // pred_check
      _
    $region7: #{tpu_custom_call.1} parent=1 // pred_check_branch
      %25 = sbr.rel (0) target = $region9
    $region8: #{tpu_custom_call.1} parent=1 // pred_region
      %27 = vsyncadd [#allocation6], 0
      %s28 = sshll.u32 %s1, 4
      %s29 = int_to_ptr.hbm [resolvable:$true] %s28
      %s30 = sshll.u32 [#allocation5], 4
      %s31 = int_to_ptr.vmem [resolvable:$true] %s30
      %36 = dma.hbm_to_vmem [thread:$0]  %s29, 256, %s31, [#allocation6], 128, 128, 8
    $region9: #{tpu_custom_call.1} parent=1 // pred_fallthru
      _
    // Predicated region
    $region10: #{tpu_custom_call.1} parent=1 // pred_check
      _
    $region11: #{tpu_custom_call.1} parent=1 // pred_check_branch
      %38 = sbr.rel (0) target = $region13
    $region12: #{tpu_custom_call.1} parent=1 // pred_region
      %40 = vsyncadd [#allocation6], 0
      %s41 = sshll.u32 %s2, 4
      %s42 = int_to_ptr.hbm [resolvable:$true] %s41
      %s43 = sshll.u32 [#allocation7], 4
      %s44 = int_to_ptr.vmem [resolvable:$true] %s43
      %49 = dma.hbm_to_vmem [thread:$0]  %s42, 1280, %s44, [#allocation6], 256, 256, 16
    $region13: #{tpu_custom_call.1} parent=1 // pred_fallthru
      _
    // Predicated region
    $region14: #{tpu_custom_call.1} parent=1 // pred_check
      _
    $region15: #{tpu_custom_call.1} parent=1 // pred_check_branch
      %51 = sbr.rel (0) target = $region17
    $region16: #{tpu_custom_call.1} parent=1 // pred_region
      %53 = dma.done [#allocation3], 256
    $region17: #{tpu_custom_call.1} parent=1 // pred_fallthru
      _
    // Predicated region
    $region18: #{tpu_custom_call.1} parent=1 // pred_check
      _
    $region19: #{tpu_custom_call.1} parent=1 // pred_check_branch
      %55 = sbr.rel (0) target = $region21
    $region20: #{tpu_custom_call.1} parent=1 // pred_region
      %57 = dma.done [#allocation6], 256
    $region21: #{tpu_custom_call.1} parent=1 // pred_fallthru
      _
    // Predicated region
    $region22: #{tpu_custom_call.1} parent=1 // pred_check
      _
    $region23: #{tpu_custom_call.1} parent=1 // pred_check_branch
      %59 = sbr.rel (0) target = $region25
    $region24: #{tpu_custom_call.1} parent=1 // pred_region
      %61 = dma.done [#allocation6], 1280
    $region25: #{tpu_custom_call.1} parent=1 // pred_fallthru
      _
    %v62 = vld [vmem:[#allocation2] sm:$0xff]
    %v63 = vld [vmem:[#allocation2 + $0x8] sm:$0xff]
    %vm64 = vcmask 130048
    %v65 = vsel %vm64, %v62, 0.0
    %v66 = vsel %vm64, %v63, 0.0
    %v67 = vadd.f32 %v65, %v66
    %v68 = vrot.slane %v67, 4
    %v69 = vadd.f32 %v67, %v68
    %v70 = vrot.slane %v69, 2
    %v71 = vadd.f32 %v69, %v70
    %v72 = vrot.slane %v71, 1
    %v73 = vadd.f32 %v71, %v72
    %v74 = vadd.f32 %v73, 1e-05
    %v75 = vrsqrt.pop %v74
    %v76 = vmul.f32 %v75, %v74
    %v77 = vmul.f32 %v76, %v75
    %v78 = vmul.f32 0.5, %v77
    %v79 = vsub.f32 1.5, %v78
    %v80 = vmul.f32 %v75, %v79
    %vm81 = vweird.f32 %v74
    %vm82 = vweird.f32 %v75
    %vm83 = vmor %vm81, %vm82
    %v84 = vsel %vm83, %v75, %v80
    %v85 = vlaneseq
    %v86 = vshrl.u32 %v85, 7
    %88 = vset.pattern.permute.xlu0 %v86
    %89 = vperm.xlu0 %88, %v84
    %v90 = vpop.permute.xlu0 %89
    %v91 = vlaneseq
    %v92 = vshrl.u32 %v91, 7
    %v93 = vadd.s32 %v92, 8
    %94 = vset.pattern.permute.xlu0 %v93
    %95 = vperm.xlu0 %94, %v84
    %v96 = vpop.permute.xlu0 %95
    %v97 = vmul.f32 %v90, %v62
    %v98 = vmul.f32 %v96, %v63
    %v99 = vmul.f32 %v97, %v84
    %v100 = vmul.f32 %v98, %v84
    %v101 = vld [vmem:[#allocation7] sm:$0xff]
    %v102 = vld [vmem:[#allocation7 + $0x8] sm:$0xff]
    %v103 = vld [vmem:[#allocation7 + $0x10] sm:$0xff]
    %v104 = vld [vmem:[#allocation7 + $0x18] sm:$0xff]
    %v105 = vld [vmem:[#allocation7 + $0x20] sm:$0xff]
    %v106 = vld [vmem:[#allocation7 + $0x28] sm:$0xff]
    %v107 = vld [vmem:[#allocation7 + $0x30] sm:$0xff]
    %v108 = vld [vmem:[#allocation7 + $0x38] sm:$0xff]
    %s109 = scalar_lea.vmem [#allocation7], 64
    %v110 = vld [vmem:[%s109] ss:$8 sm:$0x3]
    %v111 = vld [vmem:[#allocation5] sm:$0xff]
    %v112 = vld [vmem:[#allocation5 + $0x8] sm:$0xff]
    %vm113 = vcmask 261120
    %v115 = vsel %vm113, %v111, 0
    %v118 = vsel %vm113, %v112, 0
    %120 = vmatpush.msra.mxu0 0.0
    %121 = vmatpush.msra.mxu0 0.0
    %122 = vmatpush.msra.mxu0 0.0
    %123 = vmatpush.msra.mxu0 0.0
    %124 = vmatpush.msra.mxu0 0.0
    %125 = vmatpush.msra.mxu0 0.0
    %126 = vmatpush.msra.mxu0 0.0
    %127 = vmatpush.msra.mxu0 0.0
    %128 = vmatpush.msra.mxu0 0.0
    %129 = vmatpush.msra.mxu0 0.0
    %130 = vmatpush.msra.mxu0 0.0
    %131 = vmatpush.msra.mxu0 0.0
    %132 = vmatpush.msra.mxu0 %v107
    %133 = vmatpush.msra.mxu0 %v105
    %134 = vmatpush.msra.mxu0 %v103
    %135 = vmatpush.msra.mxu0 %v101
    %136 = vmatmul.f32.gmra.mxu0 %v115
    %v137 = vpop.f32.mrf.mxu0
    %v138 = vadd.f32 0.0, %v137
    %139 = vmatmul.f32.gmra.mxu0 %v118
    %v140 = vpop.f32.mrf.mxu0
    %v141 = vadd.f32 0.0, %v140
    %142 = vdwg.mxu0
    %143 = vmatpush.msra.mxu0 0.0
    %144 = vmatpush.msra.mxu0 0.0
    %145 = vmatpush.msra.mxu0 0.0
    %146 = vmatpush.msra.mxu0 0.0
    %147 = vmatpush.msra.mxu0 0.0
    %148 = vmatpush.msra.mxu0 0.0
    %149 = vmatpush.msra.mxu0 0.0
    %150 = vmatpush.msra.mxu0 0.0
    %151 = vmatpush.msra.mxu0 0.0
    %152 = vmatpush.msra.mxu0 0.0
    %153 = vmatpush.msra.mxu0 0.0
    %154 = vmatpush.msra.mxu0 0.0
    %155 = vmatpush.msra.mxu0 %v108
    %156 = vmatpush.msra.mxu0 %v106
    %157 = vmatpush.msra.mxu0 %v104
    %158 = vmatpush.msra.mxu0 %v102
    %159 = vmatmul.f32.gmra.mxu0 %v115
    %v160 = vpop.f32.mrf.mxu0
    %v161 = vadd.f32 0.0, %v160
    %162 = vmatmul.f32.gmra.mxu0 %v118
    %v163 = vpop.f32.mrf.mxu0
    %v164 = vadd.f32 0.0, %v163
    %165 = vdwg.mxu0
    %v167 = vperm.slane %v110, 0
    %v168 = vperm.slane %v110, 1
    %v172 = vsel %vm64, %v99, 0
    %v175 = vsel %vm64, %v100, 0
    %177 = vmatpush.msra.mxu0 0.0
    %178 = vmatpush.msra.mxu0 0.0
    %179 = vmatpush.msra.mxu0 0.0
    %180 = vmatpush.msra.mxu0 0.0
    %181 = vmatpush.msra.mxu0 0.0
    %182 = vmatpush.msra.mxu0 0.0
    %183 = vmatpush.msra.mxu0 0.0
    %184 = vmatpush.msra.mxu0 0.0
    %185 = vmatpush.msra.mxu0 0.0
    %186 = vmatpush.msra.mxu0 0.0
    %187 = vmatpush.msra.mxu0 0.0
    %188 = vmatpush.msra.mxu0 0.0
    %189 = vmatpush.msra.mxu0 0.0
    %190 = vmatpush.msra.mxu0 0.0
    %191 = vmatpush.msra.mxu0 %v141
    %192 = vmatpush.msra.mxu0 %v138
    %193 = vmatmul.f32.gmra.mxu0 %v172
    %v194 = vpop.f32.mrf.mxu0
    %v195 = vadd.f32 %v167, %v194
    %196 = vmatmul.f32.gmra.mxu0 %v175
    %v197 = vpop.f32.mrf.mxu0
    %v198 = vadd.f32 %v167, %v197
    %199 = vdwg.mxu0
    %200 = vmatpush.msra.mxu0 0.0
    %201 = vmatpush.msra.mxu0 0.0
    %202 = vmatpush.msra.mxu0 0.0
    %203 = vmatpush.msra.mxu0 0.0
    %204 = vmatpush.msra.mxu0 0.0
    %205 = vmatpush.msra.mxu0 0.0
    %206 = vmatpush.msra.mxu0 0.0
    %207 = vmatpush.msra.mxu0 0.0
    %208 = vmatpush.msra.mxu0 0.0
    %209 = vmatpush.msra.mxu0 0.0
    %210 = vmatpush.msra.mxu0 0.0
    %211 = vmatpush.msra.mxu0 0.0
    %212 = vmatpush.msra.mxu0 0.0
    %213 = vmatpush.msra.mxu0 0.0
    %214 = vmatpush.msra.mxu0 %v164
    %215 = vmatpush.msra.mxu0 %v161
    %216 = vmatmul.f32.gmra.mxu0 %v172
    %v217 = vpop.f32.mrf.mxu0
    %v218 = vadd.f32 %v168, %v217
    %219 = vmatmul.f32.gmra.mxu0 %v175
    %v220 = vpop.f32.mrf.mxu0
    %v221 = vadd.f32 %v168, %v220
    %222 = vdwg.mxu0
    %v223 = vmax.f32 %v195, 0.0
    %v224 = vmax.f32 %v218, 0.0
    %v225 = vmax.f32 %v198, 0.0
    %v226 = vmax.f32 %v221, 0.0
    %227 = vst [vmem:[#allocation8] sm:$0xff] %v223
    %228 = vst [vmem:[#allocation8 + $0x8] sm:$0xff] %v225
    %s229 = scalar_lea.vmem [#allocation8], 16
    %230 = vst [vmem:[%s229] sm:$0xff] %v224
    %231 = vst [vmem:[%s229 + $0x8] sm:$0xff] %v226
    // Predicated region
    $region26: #{tpu_custom_call.1} parent=1 // pred_check
      _
    $region27: #{tpu_custom_call.1} parent=1 // pred_check_branch
      %233 = sbr.rel (0) target = $region29
    $region28: #{tpu_custom_call.1} parent=1 // pred_region
      %235 = vsyncadd [#allocation4], 0
      %s236 = sshll.u32 [#allocation8], 4
      %s237 = int_to_ptr.vmem [resolvable:$true] %s236
      %s238 = sshll.u32 %s3, 4
      %s239 = int_to_ptr.hbm [resolvable:$true] %s238
      %244 = dma.vmem_to_hbm [thread:$0]  %s237, 512, %s239, [#allocation4], 128, 128, 8
    $region29: #{tpu_custom_call.1} parent=1 // pred_fallthru
      _
    // Predicated region
    $region30: #{tpu_custom_call.1} parent=1 // pred_check
      _
    $region31: #{tpu_custom_call.1} parent=1 // pred_check_branch
      %246 = sbr.rel (0) target = $region33
    $region32: #{tpu_custom_call.1} parent=1 // pred_region
      %248 = dma.done [#allocation4], 512
    $region33: #{tpu_custom_call.1} parent=1 // pred_fallthru
      _
    %249 = vsyncpa [#allocation3], 1
    %250 = vsyncpa [#allocation6], 1
    %251 = vsyncpa [#allocation4], 1

</llo_original>
